<compile_context>
chip_gen: v5e
topology: v5e:2x2
jax: 0.10.0
libtpu: 0.0.40
codegen_flags: <defaults>
</compile_context>

<pallas_src>
import functools

import jax
import jax.numpy as jnp
from jax.experimental import pallas as pl
from jax.experimental.pallas import tpu as pltpu

HIDDEN = 300
HIDDEN_PAD = 384  # next multiple of 128 -> lane-dense output / weight / bias


def _round_up(v, m):
    return (v + m - 1) // m * m


def _filternet_kernel(x_ref, w_ref, b_ref, o_ref):
    # x_ref: (TB, K) f32   w_ref: (K, 384) bf16
    # b_ref: (1, 384) f32  o_ref: (TB, 384) out_dtype
    #
    # bf16 cast of the activations happens here (in-kernel) so x only costs
    # one f32 read from HBM; the matmul runs on the native bf16 MXU path with
    # f32 accumulation.
    x_bf16 = x_ref[...].astype(jnp.bfloat16)
    acc = jnp.dot(x_bf16, w_ref[...], preferred_element_type=jnp.float32)
    # Bias-add + ReLU in f32; cast only at the store (out_dtype may be bf16).
    o_ref[...] = jnp.maximum(acc + b_ref[...], 0.0).astype(o_ref.dtype)


def prepare_filternet_params(weight, bias, compute_dtype=jnp.bfloat16):
    """One-time (hoisted) param prep: transpose, cast to bf16, pad 300 -> 384.

    weight: (300, input_dim) as in nn.Linear.  bias: (300,).
    Returns (w_t_pad: (input_dim, 384) bf16, b_pad: (1, 384) f32).
    Pad columns are zero, so the padded output columns are exactly zero.
    """
    k = weight.shape[1]
    w_t = jnp.zeros((k, HIDDEN_PAD), compute_dtype)
    w_t = w_t.at[:, :HIDDEN].set(weight.T.astype(compute_dtype))
    b = jnp.zeros((1, HIDDEN_PAD), jnp.float32)
    b = b.at[:, :HIDDEN].set(bias.astype(jnp.float32))
    return w_t, b


def _choose_batch_tile(batch, block_b):
    b8 = _round_up(batch, 8)
    tb = min(_round_up(block_b, 8), b8)
    if b8 > 8:
        # v7x: keep >= 2 grid steps so dimension_semantics=("parallel",) can
        # shard batch tiles across both TensorCores (neutral on v5e/v6e).
        tb = min(tb, _round_up(pl.cdiv(b8, 2), 8))
    return max(tb, 8)


@functools.partial(jax.jit, static_argnames=("block_b", "out_dtype"))
def filternet_forward_padded(x, w_t_pad, b_pad, *, block_b=1024,
                             out_dtype=jnp.float32):
    """Linear(input_dim, 300) + ReLU, returned as the lane-dense (B, 384) slab.

    Columns 300..383 are exactly zero; preferred entry point for downstream
    consumers (avoids an extra HBM read+write pass for the [:, :300] slice).
    x: (B, *) flattened row-major to (B, input_dim), matching torch .view.
    """
    B = x.shape[0]
    K = w_t_pad.shape[0]

    flat = 1
    for d in x.shape[1:]:
        flat *= d
    if flat != K:
        raise ValueError(
            f"FilterNet: prod(x.shape[1:])={flat} != input_dim={K}")

    # Flatten like x.view(B, input_dim); keep f32 (cast happens in-kernel).
    x2 = x.reshape(B, K)

    tb = _choose_batch_tile(B, block_b)
    # Partial last tile (and B < tb) is handled by Pallas block clamping /
    # masked stores -> no jnp.pad copy of the whole activation tensor, and
    # the output has exactly B rows (no garbage pad rows to slice off).
    grid = (pl.cdiv(B, tb),)

    # VMEM at tb=1024, K=256: x 2x1 MiB + w 2x0.19 MiB + out(f32) 2x1.5 MiB
    # ~= 5.5 MiB -> comfortably under the 32 MiB scoped default on all gens.
    return pl.pallas_call(
        _filternet_kernel,
        out_shape=jax.ShapeDtypeStruct((B, HIDDEN_PAD), out_dtype),
        grid=grid,
        in_specs=[
            pl.BlockSpec((tb, K), lambda i: (i, 0)),          # x tile (pipelined, f32)
            pl.BlockSpec((K, HIDDEN_PAD), lambda i: (0, 0)),  # weight: VMEM-resident
            pl.BlockSpec((1, HIDDEN_PAD), lambda i: (0, 0)),  # bias:   VMEM-resident
        ],
        out_specs=pl.BlockSpec((tb, HIDDEN_PAD), lambda i: (i, 0)),
        compiler_params=pltpu.CompilerParams(
            dimension_semantics=("parallel",),
        ),
    )(x2, w_t_pad, b_pad)


@functools.partial(jax.jit, static_argnames=("block_b", "out_dtype"))
def filternet_forward(x, w_t_pad, b_pad, *, block_b=1024,
                      out_dtype=jnp.float32):
    """Torch-equivalent FilterNet.forward: returns (B, 300)."""
    out = filternet_forward_padded(x, w_t_pad, b_pad, block_b=block_b,
                                   out_dtype=out_dtype)
    # Single slice at the module boundary; prefer filternet_forward_padded in
    # hot paths so the consumer can fuse / skip this pass.
    return out[:, :HIDDEN]


if __name__ == "__main__":
    key = jax.random.PRNGKey(0)
    k_x, k_w, k_b = jax.random.split(key, 3)

    # Small shapes: batch=2, input flattens to input_dim=256 (e.g. (2, 4, 8, 8)).
    B = 2
    input_dim = 256

    x = jax.random.normal(k_x, (B, 4, 8, 8), dtype=jnp.float32)  # views to (2, 256)

    # Deterministic params (nn.Linear shapes: weight (300, input_dim), bias (300,)).
    bound = 1.0 / (input_dim ** 0.5)
    weight = jax.random.uniform(k_w, (HIDDEN, input_dim), jnp.float32, -bound, bound)
    bias = jax.random.uniform(k_b, (HIDDEN,), jnp.float32, -bound, bound)

    # Param prep is hoisted: done once, reused across forward calls.
    w_t_pad, b_pad = prepare_filternet_params(weight, bias)

    # Lane-dense (B, 384) result: pad columns must be exactly zero.
    out_pad = filternet_forward_padded(x, w_t_pad, b_pad)
    out_pad = jax.block_until_ready(out_pad)
    assert out_pad.shape == (B, HIDDEN_PAD)
    assert bool(jnp.all(out_pad[:, HIDDEN:] == 0.0))

    # Torch-equivalent (B, 300) output.
    out = filternet_forward(x, w_t_pad, b_pad)
    out = jax.block_until_ready(out)
    assert out.shape == (B, HIDDEN)

    x2 = x.reshape(B, input_dim)

    # Tight check vs a reference using the same bf16 operand quantization
    # (f32 MXU accumulation, f32 bias + ReLU).
    ref_bf16 = jnp.maximum(
        jnp.dot(x2.astype(jnp.bfloat16), weight.T.astype(jnp.bfloat16),
                preferred_element_type=jnp.float32) + bias, 0.0)
    assert jnp.allclose(out, ref_bf16, atol=1e-3, rtol=1e-3)

    # Loose check vs the full-f32 reference (only bf16 operand quantization error).
    ref_f32 = jnp.maximum(x2 @ weight.T + bias, 0.0)
    assert jnp.allclose(out, ref_f32, atol=5e-2, rtol=5e-2)

    # bf16 output path (halves the dominant output stream when tolerated).
    out_bf16 = filternet_forward_padded(x, w_t_pad, b_pad, out_dtype=jnp.bfloat16)
    out_bf16 = jax.block_until_ready(out_bf16)
    assert out_bf16.dtype == jnp.bfloat16
    assert jnp.allclose(out_bf16[:, :HIDDEN].astype(jnp.float32), ref_bf16,
                        atol=2e-2, rtol=2e-2)

    print("KERNEL_OK")
</pallas_src>

<mosaic_0001>
module attributes {stable_mosaic.version = 11 : i64} {
  func.func @_filternet_kernel(%arg0: i32, %arg1: memref<8x256xf32, #tpu.memory_space<vmem>>, %arg2: memref<256x384xbf16, #tpu.memory_space<vmem>>, %arg3: memref<1x384xf32, #tpu.memory_space<vmem>>, %arg4: memref<8x384xf32, #tpu.memory_space<vmem>>) attributes {dimension_semantics = [#tpu.dimension_semantics<parallel>], iteration_bounds = array<i64: 1>, scalar_prefetch = 0 : i64, scratch_operands = 0 : i64, tpu.core_type = #tpu.core_type<tc>, window_params = [{transform_indices = @transform_0, window_bounds = array<i64: 8, 256>}, {pipeline_mode = #tpu.pipeline_mode<synchronous>, transform_indices = @transform_1, window_bounds = array<i64: 256, 384>}, {pipeline_mode = #tpu.pipeline_mode<synchronous>, transform_indices = @transform_2, window_bounds = array<i64: 1, 384>}, {transform_indices = @transform_3, window_bounds = array<i64: 8, 384>}]} {
    %c0 = arith.constant 0 : index
    %c0_0 = arith.constant 0 : index
    %0 = vector.load %arg1[%c0, %c0_0] : memref<8x256xf32, #tpu.memory_space<vmem>>, vector<8x256xf32>
    %1 = arith.truncf %0 : vector<8x256xf32> to vector<8x256xbf16>
    %c0_1 = arith.constant 0 : index
    %c0_2 = arith.constant 0 : index
    %2 = vector.load %arg2[%c0_1, %c0_2] : memref<256x384xbf16, #tpu.memory_space<vmem>>, vector<256x384xbf16>
    %cst = arith.constant dense<0.000000e+00> : vector<8x384xf32>
    %3 = tpu.matmul %1, %2, %cst {dimension_numbers = #tpu.dot_dimension_numbers<[1], [0], [0], [1], [0, 0, 1, 1], [], []>} : vector<8x256xbf16>, vector<256x384xbf16>, vector<8x384xf32> -> vector<8x384xf32>
    %c0_3 = arith.constant 0 : index
    %c0_4 = arith.constant 0 : index
    %4 = vector.load %arg3[%c0_3, %c0_4] : memref<1x384xf32, #tpu.memory_space<vmem>>, vector<1x384xf32>
    %5 = vector.broadcast %4 : vector<1x384xf32> to vector<8x384xf32>
    %6 = arith.addf %3, %5 : vector<8x384xf32>
    %cst_5 = arith.constant 0.000000e+00 : f32
    %7 = vector.broadcast %cst_5 : f32 to vector<8x384xf32>
    %8 = arith.maximumf %6, %7 : vector<8x384xf32>
    %c0_6 = arith.constant 0 : index
    %c0_7 = arith.constant 0 : index
    %9 = vector.load %arg4[%c0_6, %c0_7] : memref<8x384xf32, #tpu.memory_space<vmem>>, vector<8x384xf32>
    tpu.vector_store %arg4[%c0_6, %c0_7], %8 {strides = array<i32>} : memref<8x384xf32, #tpu.memory_space<vmem>>, vector<8x384xf32>,
    return
  }
  func.func @transform_0(%arg0: i32) -> (i32, i32) {
    %c0_i32 = arith.constant 0 : i32
    %c0_i32_0 = arith.constant 0 : i32
    return %arg0, %c0_i32 : i32, i32
  }
  func.func @transform_1(%arg0: i32) -> (i32, i32) {
    %c0_i32 = arith.constant 0 : i32
    %c0_i32_0 = arith.constant 0 : i32
    %c0_i32_1 = arith.constant 0 : i32
    return %c0_i32, %c0_i32_0 : i32, i32
  }
  func.func @transform_2(%arg0: i32) -> (i32, i32) {
    %c0_i32 = arith.constant 0 : i32
    %c0_i32_0 = arith.constant 0 : i32
    %c0_i32_1 = arith.constant 0 : i32
    return %c0_i32, %c0_i32_0 : i32, i32
  }
  func.func @transform_3(%arg0: i32) -> (i32, i32) {
    %c0_i32 = arith.constant 0 : i32
    %c0_i32_0 = arith.constant 0 : i32
    return %arg0, %c0_i32 : i32, i32
  }
}

</mosaic_0001>

<llo_original>
// kernel: filternet_forward_padded.1
$region0: #{filternet_forward_padded.1}
  #allocation0 [shape = 'u32[]', space=smem, size = 0x4, offset = 0x4, fixed_abs, tag = 'smem constant byte address 0x4 - core index']
  #allocation1 [shape = 'u32[72,128]{1,0:T(1,128)}', space=vmem, size = 0x9000, scoped, tag = 'internal scratch']
  %s0 = inlined_call_operand.vmem [shape: f32[2,256], index: 0, kind: input, shape index: {}]
  %s1 = inlined_call_operand.hbm [shape: bf16[256,384], index: 1, kind: input, shape index: {}]
  %s2 = inlined_call_operand.vmem [shape: f32[1,384], index: 2, kind: input, shape index: {}]
  %s3 = inlined_call_operand.hbm [shape: f32[2,384], index: 3, kind: output, shape index: {}]
  %s4 = sld [smem:[#allocation0]]
  $region26: #{filternet_forward_padded.1} parent=0
    _
  %s6 = ssub.s32 1, %s4
  %s7 = scalar_select 0, %s6, %s4
  $region1: #{filternet_forward_padded.1} parent=0
    #allocation2 [shape = 'u8[196608]{0}', space=vmem, size = 0x30000, scoped, tag = 'input window, operand 1, single buffered']
    #allocation3 [shape = 's32[1]{0}', space=sflag, size = 0x4, scoped, tag = 'scoped memory for filternet_forward_padded.1']
    #allocation4 [shape = 's32[1]{0}', space=sflag, size = 0x4, scoped, tag = 'scoped memory for filternet_forward_padded.1']
    #allocation5 [shape = 'u8[12288]{0}', space=vmem, size = 0x3000, scoped, tag = 'output window, operand 0, single buffered']
    %8 = vsyncpa [#allocation3], 0
    %9 = vsyncpa [#allocation4], 0
    // Predicated region
    $region2: #{filternet_forward_padded.1} parent=1 // pred_check
      _
    $region3: #{filternet_forward_padded.1} parent=1 // pred_check_branch
      %11 = sbr.rel (0) target = $region5
    $region4: #{filternet_forward_padded.1} parent=1 // pred_region
      _
    $region5: #{filternet_forward_padded.1} parent=1 // pred_fallthru
      _
    // Predicated region
    $region6: #{filternet_forward_padded.1} parent=1 // pred_check
      _
    $region7: #{filternet_forward_padded.1} parent=1 // pred_check_branch
      %13 = sbr.rel (0) target = $region9
    $region8: #{filternet_forward_padded.1} parent=1 // pred_region
      %15 = vsyncadd [#allocation3], 0
      %s16 = sshll.u32 %s1, 4
      %s17 = int_to_ptr.hbm [resolvable:$true] %s16
      %s18 = sshll.u32 [#allocation2], 4
      %s19 = int_to_ptr.vmem [resolvable:$true] %s18
      %24 = dma.hbm_to_vmem [thread:$0]  %s17, 6144, %s19, [#allocation3], 192, 192, 12
    $region9: #{filternet_forward_padded.1} parent=1 // pred_fallthru
      _
    // Predicated region
    $region10: #{filternet_forward_padded.1} parent=1 // pred_check
      _
    $region11: #{filternet_forward_padded.1} parent=1 // pred_check_branch
      %26 = sbr.rel (0) target = $region13
    $region12: #{filternet_forward_padded.1} parent=1 // pred_region
      _
    $region13: #{filternet_forward_padded.1} parent=1 // pred_fallthru
      _
    // Predicated region
    $region14: #{filternet_forward_padded.1} parent=1 // pred_check
      _
    $region15: #{filternet_forward_padded.1} parent=1 // pred_check_branch
      %28 = sbr.rel (0) target = $region17
    $region16: #{filternet_forward_padded.1} parent=1 // pred_region
      %30 = dma.done [#allocation3], 6144
    $region17: #{filternet_forward_padded.1} parent=1 // pred_fallthru
      _
    %v31 = vld [vmem:[%s0] sm:$0xf]
    %v32 = vld [vmem:[%s0 + $0x4] sm:$0xf]
    %v33 = vld [vmem:[%s0 + $0x8] sm:$0xf]
    %v34 = vld [vmem:[%s0 + $0xc] sm:$0xf]
    %39 = vst [vmem:[#allocation1] ss:$4 sm:$0xff] %v31
    %s40 = scalar_lea.vmem [#allocation1], 1
    %41 = vst [vmem:[%s40] ss:$4 sm:$0xff] %v32
    %s42 = scalar_lea.vmem [#allocation1], 2
    %43 = vst [vmem:[%s42] ss:$4 sm:$0xff] %v33
    %s44 = scalar_lea.vmem [#allocation1], 3
    %45 = vst [vmem:[%s44] ss:$4 sm:$0xff] %v34
    %v46 = vld.sshfl [vmem:[#allocation1] sm:$0xff pattern:$0x73625140]
    %v47 = vld.sshfl [vmem:[#allocation1 + $0x8] sm:$0xff pattern:$0x73625140]
    %v50 = vpack.c.bf16 %v46, %v46
    %v51 = vpack.c.bf16 %v47, %v47
    %v52 = vld [vmem:[#allocation2] sm:$0xff]
    %v53 = vld [vmem:[#allocation2 + $0x8] sm:$0xf]
    %v54 = vld [vmem:[#allocation2 + $0xc] sm:$0xff]
    %v55 = vld [vmem:[#allocation2 + $0x14] sm:$0xf]
    %v56 = vld [vmem:[#allocation2 + $0x18] sm:$0xff]
    %v57 = vld [vmem:[#allocation2 + $0x20] sm:$0xf]
    %v58 = vld [vmem:[#allocation2 + $0x24] sm:$0xff]
    %v59 = vld [vmem:[#allocation2 + $0x2c] sm:$0xf]
    %v60 = vld [vmem:[#allocation2 + $0x30] sm:$0xff]
    %v61 = vld [vmem:[#allocation2 + $0x38] sm:$0xf]
    %v62 = vld [vmem:[#allocation2 + $0x3c] sm:$0xff]
    %v63 = vld [vmem:[#allocation2 + $0x44] sm:$0xf]
    %v64 = vld [vmem:[#allocation2 + $0x48] sm:$0xff]
    %v65 = vld [vmem:[#allocation2 + $0x50] sm:$0xf]
    %v66 = vld [vmem:[#allocation2 + $0x54] sm:$0xff]
    %v67 = vld [vmem:[#allocation2 + $0x5c] sm:$0xf]
    %v68 = vld [vmem:[#allocation2 + $0x60] sm:$0xff]
    %v69 = vld [vmem:[#allocation2 + $0x68] sm:$0xf]
    %v70 = vld [vmem:[#allocation2 + $0x6c] sm:$0xff]
    %v71 = vld [vmem:[#allocation2 + $0x74] sm:$0xf]
    %v72 = vld [vmem:[#allocation2 + $0x78] sm:$0xff]
    %v73 = vld [vmem:[#allocation2 + $0x80] sm:$0xf]
    %v74 = vld [vmem:[#allocation2 + $0x84] sm:$0xff]
    %v75 = vld [vmem:[#allocation2 + $0x8c] sm:$0xf]
    %v76 = vld [vmem:[#allocation2 + $0x90] sm:$0xff]
    %v77 = vld [vmem:[#allocation2 + $0x98] sm:$0xf]
    %v78 = vld [vmem:[#allocation2 + $0x9c] sm:$0xff]
    %v79 = vld [vmem:[#allocation2 + $0xa4] sm:$0xf]
    %v80 = vld [vmem:[#allocation2 + $0xa8] sm:$0xff]
    %v81 = vld [vmem:[#allocation2 + $0xb0] sm:$0xf]
    %v82 = vld [vmem:[#allocation2 + $0xb4] sm:$0xff]
    %v83 = vld [vmem:[#allocation2 + $0xbc] sm:$0xf]
    %v84 = vld [vmem:[#allocation2 + $0xc0] sm:$0xff]
    %v85 = vld [vmem:[#allocation2 + $0xc8] sm:$0xf]
    %v86 = vld [vmem:[#allocation2 + $0xcc] sm:$0xff]
    %v87 = vld [vmem:[#allocation2 + $0xd4] sm:$0xf]
    %v88 = vld [vmem:[#allocation2 + $0xd8] sm:$0xff]
    %v89 = vld [vmem:[#allocation2 + $0xe0] sm:$0xf]
    %v90 = vld [vmem:[#allocation2 + $0xe4] sm:$0xff]
    %v91 = vld [vmem:[#allocation2 + $0xec] sm:$0xf]
    %v92 = vld [vmem:[#allocation2 + $0xf0] sm:$0xff]
    %v93 = vld [vmem:[#allocation2 + $0xf8] sm:$0xf]
    %v94 = vld [vmem:[#allocation2 + $0xfc] sm:$0xff]
    %v95 = vld [vmem:[#allocation2 + $0x104] sm:$0xf]
    %v96 = vld [vmem:[#allocation2 + $0x108] sm:$0xff]
    %v97 = vld [vmem:[#allocation2 + $0x110] sm:$0xf]
    %v98 = vld [vmem:[#allocation2 + $0x114] sm:$0xff]
    %v99 = vld [vmem:[#allocation2 + $0x11c] sm:$0xf]
    %v100 = vld [vmem:[#allocation2 + $0x120] sm:$0xff]
    %v101 = vld [vmem:[#allocation2 + $0x128] sm:$0xf]
    %v102 = vld [vmem:[#allocation2 + $0x12c] sm:$0xff]
    %v103 = vld [vmem:[#allocation2 + $0x134] sm:$0xf]
    %v104 = vld [vmem:[#allocation2 + $0x138] sm:$0xff]
    %v105 = vld [vmem:[#allocation2 + $0x140] sm:$0xf]
    %v106 = vld [vmem:[#allocation2 + $0x144] sm:$0xff]
    %v107 = vld [vmem:[#allocation2 + $0x14c] sm:$0xf]
    %v108 = vld [vmem:[#allocation2 + $0x150] sm:$0xff]
    %v109 = vld [vmem:[#allocation2 + $0x158] sm:$0xf]
    %v110 = vld [vmem:[#allocation2 + $0x15c] sm:$0xff]
    %v111 = vld [vmem:[#allocation2 + $0x164] sm:$0xf]
    %v112 = vld [vmem:[#allocation2 + $0x168] sm:$0xff]
    %v113 = vld [vmem:[#allocation2 + $0x170] sm:$0xf]
    %v114 = vld [vmem:[#allocation2 + $0x174] sm:$0xff]
    %v115 = vld [vmem:[#allocation2 + $0x17c] sm:$0xf]
    %v116 = vld [vmem:[%s2] sm:$0x7]
    %v118 = vperm.slane %v116, 0
    %v119 = vperm.slane %v116, 1
    %v120 = vperm.slane %v116, 2
    %v188 = vunpack.c.l.b16 %v52
    %v189 = vunpack.c.h.b16 %v52
    %v190 = vunpack.c.l.b16 %v53
    %v191 = vunpack.c.l.b16 %v54
    %v192 = vunpack.c.h.b16 %v54
    %v193 = vunpack.c.l.b16 %v55
    %v194 = vunpack.c.l.b16 %v56
    %v195 = vunpack.c.h.b16 %v56
    %v196 = vunpack.c.l.b16 %v57
    %v197 = vunpack.c.l.b16 %v58
    %v198 = vunpack.c.h.b16 %v58
    %v199 = vunpack.c.l.b16 %v59
    %v200 = vunpack.c.l.b16 %v60
    %v201 = vunpack.c.h.b16 %v60
    %v202 = vunpack.c.l.b16 %v61
    %v203 = vunpack.c.l.b16 %v62
    %v204 = vunpack.c.h.b16 %v62
    %v205 = vunpack.c.l.b16 %v63
    %v206 = vunpack.c.l.b16 %v64
    %v207 = vunpack.c.h.b16 %v64
    %v208 = vunpack.c.l.b16 %v65
    %v209 = vunpack.c.l.b16 %v66
    %v210 = vunpack.c.h.b16 %v66
    %v211 = vunpack.c.l.b16 %v67
    %v212 = vunpack.c.l.b16 %v68
    %v213 = vunpack.c.h.b16 %v68
    %v214 = vunpack.c.l.b16 %v69
    %v215 = vunpack.c.l.b16 %v70
    %v216 = vunpack.c.h.b16 %v70
    %v217 = vunpack.c.l.b16 %v71
    %v218 = vunpack.c.l.b16 %v72
    %v219 = vunpack.c.h.b16 %v72
    %v220 = vunpack.c.l.b16 %v73
    %v221 = vunpack.c.l.b16 %v74
    %v222 = vunpack.c.h.b16 %v74
    %v223 = vunpack.c.l.b16 %v75
    %v224 = vunpack.c.l.b16 %v76
    %v225 = vunpack.c.h.b16 %v76
    %v226 = vunpack.c.l.b16 %v77
    %v227 = vunpack.c.l.b16 %v78
    %v228 = vunpack.c.h.b16 %v78
    %v229 = vunpack.c.l.b16 %v79
    %v230 = vunpack.c.l.b16 %v80
    %v231 = vunpack.c.h.b16 %v80
    %v232 = vunpack.c.l.b16 %v81
    %v233 = vunpack.c.l.b16 %v82
    %v234 = vunpack.c.h.b16 %v82
    %v235 = vunpack.c.l.b16 %v83
    %v236 = vunpack.c.l.b16 %v84
    %v237 = vunpack.c.h.b16 %v84
    %v238 = vunpack.c.l.b16 %v85
    %v239 = vunpack.c.l.b16 %v86
    %v240 = vunpack.c.h.b16 %v86
    %v241 = vunpack.c.l.b16 %v87
    %v242 = vunpack.c.l.b16 %v88
    %v243 = vunpack.c.h.b16 %v88
    %v244 = vunpack.c.l.b16 %v89
    %v245 = vunpack.c.l.b16 %v90
    %v246 = vunpack.c.h.b16 %v90
    %v247 = vunpack.c.l.b16 %v91
    %v248 = vunpack.c.l.b16 %v92
    %v249 = vunpack.c.h.b16 %v92
    %v250 = vunpack.c.l.b16 %v93
    %v251 = vunpack.c.l.b16 %v94
    %v252 = vunpack.c.h.b16 %v94
    %v253 = vunpack.c.l.b16 %v95
    %v254 = vunpack.c.l.b16 %v96
    %v255 = vunpack.c.h.b16 %v96
    %v256 = vunpack.c.l.b16 %v97
    %v257 = vunpack.c.l.b16 %v98
    %v258 = vunpack.c.h.b16 %v98
    %v259 = vunpack.c.l.b16 %v99
    %v260 = vunpack.c.l.b16 %v100
    %v261 = vunpack.c.h.b16 %v100
    %v262 = vunpack.c.l.b16 %v101
    %v263 = vunpack.c.l.b16 %v102
    %v264 = vunpack.c.h.b16 %v102
    %v265 = vunpack.c.l.b16 %v103
    %v266 = vunpack.c.l.b16 %v104
    %v267 = vunpack.c.h.b16 %v104
    %v268 = vunpack.c.l.b16 %v105
    %v269 = vunpack.c.l.b16 %v106
    %v270 = vunpack.c.h.b16 %v106
    %v271 = vunpack.c.l.b16 %v107
    %v272 = vunpack.c.l.b16 %v108
    %v273 = vunpack.c.h.b16 %v108
    %v274 = vunpack.c.l.b16 %v109
    %v275 = vunpack.c.l.b16 %v110
    %v276 = vunpack.c.h.b16 %v110
    %v277 = vunpack.c.l.b16 %v111
    %v278 = vunpack.c.l.b16 %v112
    %v279 = vunpack.c.h.b16 %v112
    %v280 = vunpack.c.l.b16 %v113
    %v281 = vunpack.c.l.b16 %v114
    %v282 = vunpack.c.h.b16 %v114
    %v283 = vunpack.c.l.b16 %v115
    %v284 = vpack.c.b16 %v191, %v188
    %v285 = vpack.c.b16 %v192, %v189
    %v286 = vpack.c.b16 %v193, %v190
    %v287 = vpack.c.b16 %v197, %v194
    %v288 = vpack.c.b16 %v198, %v195
    %v289 = vpack.c.b16 %v199, %v196
    %v290 = vpack.c.b16 %v203, %v200
    %v291 = vpack.c.b16 %v204, %v201
    %v292 = vpack.c.b16 %v205, %v202
    %v293 = vpack.c.b16 %v209, %v206
    %v294 = vpack.c.b16 %v210, %v207
    %v295 = vpack.c.b16 %v211, %v208
    %v296 = vpack.c.b16 %v215, %v212
    %v297 = vpack.c.b16 %v216, %v213
    %v298 = vpack.c.b16 %v217, %v214
    %v299 = vpack.c.b16 %v221, %v218
    %v300 = vpack.c.b16 %v222, %v219
    %v301 = vpack.c.b16 %v223, %v220
    %v302 = vpack.c.b16 %v227, %v224
    %v303 = vpack.c.b16 %v228, %v225
    %v304 = vpack.c.b16 %v229, %v226
    %v305 = vpack.c.b16 %v233, %v230
    %v306 = vpack.c.b16 %v234, %v231
    %v307 = vpack.c.b16 %v235, %v232
    %v308 = vpack.c.b16 %v239, %v236
    %v309 = vpack.c.b16 %v240, %v237
    %v310 = vpack.c.b16 %v241, %v238
    %v311 = vpack.c.b16 %v245, %v242
    %v312 = vpack.c.b16 %v246, %v243
    %v313 = vpack.c.b16 %v247, %v244
    %v314 = vpack.c.b16 %v251, %v248
    %v315 = vpack.c.b16 %v252, %v249
    %v316 = vpack.c.b16 %v253, %v250
    %v317 = vpack.c.b16 %v257, %v254
    %v318 = vpack.c.b16 %v258, %v255
    %v319 = vpack.c.b16 %v259, %v256
    %v320 = vpack.c.b16 %v263, %v260
    %v321 = vpack.c.b16 %v264, %v261
    %v322 = vpack.c.b16 %v265, %v262
    %v323 = vpack.c.b16 %v269, %v266
    %v324 = vpack.c.b16 %v270, %v267
    %v325 = vpack.c.b16 %v271, %v268
    %v326 = vpack.c.b16 %v275, %v272
    %v327 = vpack.c.b16 %v276, %v273
    %v328 = vpack.c.b16 %v277, %v274
    %v329 = vpack.c.b16 %v281, %v278
    %v330 = vpack.c.b16 %v282, %v279
    %v331 = vpack.c.b16 %v283, %v280
    %380 = vmatpush.bf16.msra.mxu0 %v305
    %381 = vmatpush.bf16.msra.mxu0 %v302
    %382 = vmatpush.bf16.msra.mxu0 %v299
    %383 = vmatpush.bf16.msra.mxu0 %v296
    %384 = vmatpush.bf16.msra.mxu0 %v293
    %385 = vmatpush.bf16.msra.mxu0 %v290
    %386 = vmatpush.bf16.msra.mxu0 %v287
    %387 = vmatpush.bf16.msra.mxu0 %v284
    %388 = vmatmul.bf16.gmra.mxu0 %v50
    %v389 = vpop.f32.mrf.mxu0
    %v390 = vadd.f32 %v118, %v389
    %v391 = vpop.f32.mrf.mxu0
    %392 = vdwg.mxu0
    %393 = vmatpush.bf16.msra.mxu0 %v329
    %394 = vmatpush.bf16.msra.mxu0 %v326
    %395 = vmatpush.bf16.msra.mxu0 %v323
    %396 = vmatpush.bf16.msra.mxu0 %v320
    %397 = vmatpush.bf16.msra.mxu0 %v317
    %398 = vmatpush.bf16.msra.mxu0 %v314
    %399 = vmatpush.bf16.msra.mxu0 %v311
    %400 = vmatpush.bf16.msra.mxu0 %v308
    %401 = vmatmul.bf16.gmra.mxu0 %v51
    %v402 = vpop.f32.mrf.mxu0
    %v403 = vadd.f32 %v390, %v402
    %v404 = vpop.f32.mrf.mxu0
    %405 = vdwg.mxu0
    %406 = vmatpush.bf16.msra.mxu0 %v306
    %407 = vmatpush.bf16.msra.mxu0 %v303
    %408 = vmatpush.bf16.msra.mxu0 %v300
    %409 = vmatpush.bf16.msra.mxu0 %v297
    %410 = vmatpush.bf16.msra.mxu0 %v294
    %411 = vmatpush.bf16.msra.mxu0 %v291
    %412 = vmatpush.bf16.msra.mxu0 %v288
    %413 = vmatpush.bf16.msra.mxu0 %v285
    %414 = vmatmul.bf16.gmra.mxu0 %v50
    %v415 = vpop.f32.mrf.mxu0
    %v416 = vadd.f32 %v119, %v415
    %v417 = vpop.f32.mrf.mxu0
    %418 = vdwg.mxu0
    %419 = vmatpush.bf16.msra.mxu0 %v330
    %420 = vmatpush.bf16.msra.mxu0 %v327
    %421 = vmatpush.bf16.msra.mxu0 %v324
    %422 = vmatpush.bf16.msra.mxu0 %v321
    %423 = vmatpush.bf16.msra.mxu0 %v318
    %424 = vmatpush.bf16.msra.mxu0 %v315
    %425 = vmatpush.bf16.msra.mxu0 %v312
    %426 = vmatpush.bf16.msra.mxu0 %v309
    %427 = vmatmul.bf16.gmra.mxu0 %v51
    %v428 = vpop.f32.mrf.mxu0
    %v429 = vadd.f32 %v416, %v428
    %v430 = vpop.f32.mrf.mxu0
    %431 = vdwg.mxu0
    %432 = vmatpush.bf16.msra.mxu0 %v307
    %433 = vmatpush.bf16.msra.mxu0 %v304
    %434 = vmatpush.bf16.msra.mxu0 %v301
    %435 = vmatpush.bf16.msra.mxu0 %v298
    %436 = vmatpush.bf16.msra.mxu0 %v295
    %437 = vmatpush.bf16.msra.mxu0 %v292
    %438 = vmatpush.bf16.msra.mxu0 %v289
    %439 = vmatpush.bf16.msra.mxu0 %v286
    %440 = vmatmul.bf16.gmra.mxu0 %v50
    %v441 = vpop.f32.mrf.mxu0
    %v442 = vadd.f32 %v120, %v441
    %v443 = vpop.f32.mrf.mxu0
    %444 = vdwg.mxu0
    %445 = vmatpush.bf16.msra.mxu0 %v331
    %446 = vmatpush.bf16.msra.mxu0 %v328
    %447 = vmatpush.bf16.msra.mxu0 %v325
    %448 = vmatpush.bf16.msra.mxu0 %v322
    %449 = vmatpush.bf16.msra.mxu0 %v319
    %450 = vmatpush.bf16.msra.mxu0 %v316
    %451 = vmatpush.bf16.msra.mxu0 %v313
    %452 = vmatpush.bf16.msra.mxu0 %v310
    %453 = vmatmul.bf16.gmra.mxu0 %v51
    %v454 = vpop.f32.mrf.mxu0
    %v455 = vadd.f32 %v442, %v454
    %v456 = vpop.f32.mrf.mxu0
    %457 = vdwg.mxu0
    %v458 = vmax.f32 %v403, 0.0
    %v459 = vmax.f32 %v429, 0.0
    %v460 = vmax.f32 %v455, 0.0
    %v464 = vrot.slane %v459, 6
    %v465 = vrot.slane %v460, 4
    %vm466 = vcmask 1041408
    %v467 = vsel %vm466, %v458, %v464
    %vm468 = vcmask 1043456
    %v469 = vsel %vm468, %v467, %v465
    %vm470 = vcmask 1043458
    %v471 = vsel %vm470, %v458, %v464
    %vm472 = vcmask 1045506
    %v473 = vsel %vm472, %v471, %v465
    %v474 = vrot.slane %v473, 2
    %vm475 = vcmask 1045508
    %v476 = vsel %vm475, %v458, %v464
    %v477 = vsel %vm468, %v465, %v476
    %v478 = vrot.slane %v477, 4
    %vm479 = vcmask 1045504
    %v480 = vsel %vm479, %v464, %v458
    %v481 = vsel %vm472, %v465, %v480
    %v482 = vrot.slane %v481, 6
    %487 = vst [vmem:[#allocation5] sm:$0x3f] %v469
    %488 = vst [vmem:[#allocation5 + $0x6] sm:$0x3f] %v474
    %489 = vst [vmem:[#allocation5 + $0xc] sm:$0x3f] %v478
    %490 = vst [vmem:[#allocation5 + $0x12] sm:$0x3f] %v482
    // Predicated region
    $region18: #{filternet_forward_padded.1} parent=1 // pred_check
      _
    $region19: #{filternet_forward_padded.1} parent=1 // pred_check_branch
      %492 = sbr.rel (0) target = $region21
    $region20: #{filternet_forward_padded.1} parent=1 // pred_region
      %494 = vsyncadd [#allocation4], 288
      %s495 = sshll.u32 [#allocation5], 4
      %s496 = int_to_ptr.vmem [resolvable:$true] %s495
      %s497 = sshll.u32 %s3, 4
      %s498 = int_to_ptr.hbm [resolvable:$true] %s497
      %503 = dma.vmem_to_hbm [thread:$0]  %s496, 96, %s498, [#allocation4], 96, 96, 6
    $region21: #{filternet_forward_padded.1} parent=1 // pred_fallthru
      _
    // Predicated region
    $region22: #{filternet_forward_padded.1} parent=1 // pred_check
      _
    $region23: #{filternet_forward_padded.1} parent=1 // pred_check_branch
      %505 = sbr.rel (0) target = $region25
    $region24: #{filternet_forward_padded.1} parent=1 // pred_region
      %507 = dma.done [#allocation4], 384
    $region25: #{filternet_forward_padded.1} parent=1 // pred_fallthru
      _
    %508 = vsyncpa [#allocation3], 1
    %509 = vsyncpa [#allocation4], 1

</llo_original>
